<compile_context>
chip_gen: v7x
topology: tpu7x:2x2x1
jax: 0.10.0
libtpu: 0.0.40
codegen_flags: <defaults>
</compile_context>

<pallas_src>
import functools

import jax
import jax.numpy as jnp
from jax.experimental import pallas as pl
from jax.experimental.pallas import tpu as pltpu


def _round_up(x, m):
    return (x + m - 1) // m * m


def _cdiv(a, b):
    return -(-a // b)


# ----------------------------- Pallas kernel -------------------------------- #
def _tconv_im2col_gemm_kernel(x_ref, w_ref, b_ref, o_ref, scr_ref, *,
                              K, Wp, Cin_pad, Ltile, negative_slope):
    # x_ref:   (1, 1, Cin_pad, Lwin) bf16  dilated+padded flat input window (incl. halo)
    # w_ref:   (ct, K*K*Cin_pad)     bf16  flipped taps, tap-major columns
    # b_ref:   (ct, 1)               f32   bias
    # o_ref:   (1, ct, Ltile)        bf16  flat NCHW output tile (lane-dense, unmasked st)
    # scr_ref: (K*K*Cin_pad, Ltile)  bf16  im2col scratch, persists across grid steps
    #
    # Build the im2col scratch once per (n, l) and reuse it for every Cout tile.
    @pl.when(pl.program_id(2) == 0)
    def _build_im2col():
        for kh in range(K):                      # K*K static shifted copies (flat-shift)
            for kw in range(K):
                t = kh * K + kw
                off = kh * Wp + kw               # static flat tap offset
                scr_ref[t * Cin_pad:(t + 1) * Cin_pad, :] = (
                    x_ref[0, 0, :, off:off + Ltile])

    # One big GEMM: contraction over K*K*Cin (keeps the MXU busy even for small Cin).
    acc = jnp.dot(w_ref[...], scr_ref[...], preferred_element_type=jnp.float32)
    acc += b_ref[...]                            # (ct, 1) lane-broadcast bias
    acc = jnp.maximum(acc, acc * negative_slope)  # LeakyReLU, exact for 0 < slope < 1
    o_ref[0] = acc.astype(o_ref.dtype)           # bf16 store, lane-dense


# ------------------------------- wrapper ------------------------------------ #
def trans_conv_batch_active(x_nchw, weight, bias, *, stride, padding,
                            output_padding, negative_slope=0.01,
                            ltile_max=2048, out_dtype=jnp.bfloat16):
    """ConvTranspose2d(cin, out, K, stride, padding, output_padding, bias=True)
       -> Identity (bn=False) -> LeakyReLU(0.01).  Input NCHW f32, output NCHW bf16."""
    N, Cin, H, W = x_nchw.shape
    Cin_w, Cout, K, K2 = weight.shape
    assert Cin == Cin_w and K == K2
    assert padding <= K - 1, "padding > K-1 not supported by this pad-based lowering"
    assert output_padding < stride, "PyTorch requires output_padding < stride"

    s = stride
    Hd, Wd = (H - 1) * s + 1, (W - 1) * s + 1
    pb = K - 1 - padding                      # top / left pad
    pa = K - 1 - padding + output_padding     # bottom / right pad
    Hp, Wp = Hd + pb + pa, Wd + pb + pa
    OH, OW = Hp - K + 1, Wp - K + 1           # == (H-1)*s - 2p + K + op
    halo = (K - 1) * Wp + (K - 1)             # flat-shift read halo

    # --- spatial (L) tiling of the lane-dense flat output ------------------------
    Lout = OH * Wp
    Lout_r = _round_up(Lout, 128)
    Ltile_cap = max(128, (ltile_max // 128) * 128)
    nL = _cdiv(Lout_r, Ltile_cap)
    Ltile = _round_up(_cdiv(Lout_r, nL), 128)             # balanced tiles, mult of 128
    Lout_pad = nL * Ltile

    # flat input must cover the largest shifted read: Lout_pad + halo
    Lp_needed = Lout_pad + halo
    rows = max(Hp, _cdiv(Lp_needed, Wp))
    Lp = rows * Wp

    # --- channel padding / Cout tiling -------------------------------------------
    Cin_pad = _round_up(Cin, 8)
    KKC = K * K * Cin_pad
    if Cout % 128 == 0:
        Cout_pad, ct = Cout, 128
    elif Cout <= 256:
        Cout_pad = _round_up(Cout, 8)
        ct = Cout_pad
    else:
        Cout_pad, ct = _round_up(Cout, 128), 128
    nc = Cout_pad // ct

    # --- glue: zero-dilate + pad directly in NCHW / bf16 (no NHWC, no HBM im2col) --
    # TODO(synk): stride-phase decomposition would avoid this HBM-materialized
    #             dilated activation entirely.
    xpad = jnp.zeros((N, Cin_pad, rows, Wp), jnp.bfloat16)
    xpad = xpad.at[:, :Cin, pb:pb + Hd:s, pb:pb + Wd:s].set(x_nchw.astype(jnp.bfloat16))
    x_flat = xpad.reshape(N, Cin_pad, Lp)                  # free (contiguous) reshape

    if nL == 1:
        Lwin = Lp
        x_win = x_flat.reshape(N, 1, Cin_pad, Lp)          # free reshape
    else:
        # Halo-overlapping windows so all in-kernel lane slices stay STATIC.
        # Duplicates ~halo/Ltile of x once in HBM (few %).
        Lwin = Ltile + halo
        x_win = jnp.stack([x_flat[:, :, l * Ltile:l * Ltile + Lwin]
                           for l in range(nL)], axis=1)    # (N, nL, Cin_pad, Lwin)

    # --- glue: flipped taps -> (Cout_pad, K*K*Cin_pad), tap-major then cin ---------
    wf = weight[:, :, ::-1, ::-1].astype(jnp.bfloat16)     # (Cin, Cout, K, K), flipped
    w_t = jnp.transpose(wf, (1, 2, 3, 0))                  # (Cout, K, K, Cin)
    w_big = jnp.zeros((Cout_pad, K, K, Cin_pad), jnp.bfloat16)
    w_big = w_big.at[:Cout, :, :, :Cin].set(w_t)
    w_big = w_big.reshape(Cout_pad, KKC)

    if bias is None:
        bias = jnp.zeros((Cout,), jnp.float32)
    b_big = jnp.zeros((Cout_pad, 1), jnp.float32)
    b_big = b_big.at[:Cout, 0].set(bias.astype(jnp.float32))

    kernel = functools.partial(_tconv_im2col_gemm_kernel, K=K, Wp=Wp,
                               Cin_pad=Cin_pad, Ltile=Ltile,
                               negative_slope=negative_slope)

    out_flat = pl.pallas_call(
        kernel,
        out_shape=jax.ShapeDtypeStruct((N, Cout_pad, Lout_pad), out_dtype),
        grid_spec=pltpu.PrefetchScalarGridSpec(
            num_scalar_prefetch=0,
            grid=(N, nL, nc),                               # Cout tiles innermost
            in_specs=[
                # x window: resident across the Cout-tile axis (fetched once per (n,l))
                pl.BlockSpec((1, 1, Cin_pad, Lwin), lambda n, l, c: (n, l, 0, 0)),
                pl.BlockSpec((ct, KKC), lambda n, l, c: (c, 0)),
                pl.BlockSpec((ct, 1), lambda n, l, c: (c, 0)),
            ],
            out_specs=pl.BlockSpec((1, ct, Ltile), lambda n, l, c: (n, c, l)),
            scratch_shapes=[pltpu.VMEM((KKC, Ltile), jnp.bfloat16)],   # im2col scratch
        ),
        compiler_params=pltpu.CompilerParams(
            # c-axis must stay sequential on one core (scratch reuse); split n / l.
            dimension_semantics=("parallel", "parallel", "arbitrary"),
            vmem_limit_bytes=48 * 1024 * 1024,
        ),
    )(x_win, w_big, b_big)

    # free reshape + one cheap slice dropping channel/lane padding and wrap-around
    # columns (XLA fuses the two slices + reshape into a single copy).
    # TODO(synk): a consumer that accepts the Wp-padded layout would avoid this pass.
    out = out_flat[:, :Cout, :Lout].reshape(N, Cout, OH, Wp)[:, :, :, :OW]
    return out


# ------------------------- pure-JAX reference (NCHW) ------------------------- #
def reference(x_nchw, weight, bias, *, stride, padding, output_padding,
              negative_slope=0.01):
    N, Cin, H, W = x_nchw.shape
    _, Cout, K, _ = weight.shape
    full_H = (H - 1) * stride + K
    full_W = (W - 1) * stride + K
    full = jnp.zeros((N, Cout, full_H, full_W), jnp.float32)
    for kh in range(K):
        for kw in range(K):
            contrib = jnp.einsum('nchw,cd->ndhw', x_nchw, weight[:, :, kh, kw],
                                 precision=jax.lax.Precision.HIGHEST)
            full = full.at[:, :,
                           kh:kh + (H - 1) * stride + 1:stride,
                           kw:kw + (W - 1) * stride + 1:stride].add(contrib)
    OH = (H - 1) * stride - 2 * padding + K + output_padding
    OW = (W - 1) * stride - 2 * padding + K + output_padding
    full = jnp.pad(full, ((0, 0), (0, 0), (0, output_padding), (0, output_padding)))
    out = full[:, :, padding:padding + OH, padding:padding + OW]
    out = out + bias.reshape(1, Cout, 1, 1)
    return jnp.where(out >= 0.0, out, negative_slope * out)


# ---------------------------------- main ------------------------------------- #
if __name__ == "__main__":
    key = jax.random.PRNGKey(0)
    N, Cin, H, W = 2, 4, 16, 16
    Cout, K = 8, 3
    stride, padding, output_padding = 2, 1, 1       # module hard-codes output_padding=1

    k1, k2, k3 = jax.random.split(key, 3)
    x = jax.random.normal(k1, (N, Cin, H, W), jnp.float32)
    # deterministic synthetic params (shapes per nn.ConvTranspose2d: (Cin, Cout, K, K))
    weight = 0.1 * jax.random.normal(k2, (Cin, Cout, K, K), jnp.float32)
    bias = 0.1 * jax.random.normal(k3, (Cout,), jnp.float32)

    fwd = jax.jit(functools.partial(trans_conv_batch_active, stride=stride,
                                    padding=padding, output_padding=output_padding))
    out = jax.block_until_ready(fwd(x, weight, bias))
    assert out.shape == (N, Cout, 32, 32), out.shape
    out_f32 = out.astype(jnp.float32)

    # Tight check: reference fed the same bf16-rounded x/weights (kernel accumulates in
    # f32; remaining deviation = bf16 output rounding + f32 summation order).
    x_q = x.astype(jnp.bfloat16).astype(jnp.float32)
    w_q = weight.astype(jnp.bfloat16).astype(jnp.float32)
    ref_q = reference(x_q, w_q, bias, stride=stride, padding=padding,
                      output_padding=output_padding)
    assert jnp.allclose(out_f32, ref_q, atol=1e-2, rtol=1e-2), \
        float(jnp.max(jnp.abs(out_f32 - ref_q)))

    # Loose check vs full-f32 reference (bf16 activations/weights/output approximation).
    ref = reference(x, weight, bias, stride=stride, padding=padding,
                    output_padding=output_padding)
    assert jnp.allclose(out_f32, ref, atol=5e-2, rtol=5e-2), \
        float(jnp.max(jnp.abs(out_f32 - ref)))

    print("KERNEL_OK")
</pallas_src>

<mosaic_0001>
module attributes {stable_mosaic.version = 11 : i64} {
  func.func @_tconv_im2col_gemm_kernel(%arg0: i32, %arg1: i32, %arg2: i32, %arg3: memref<1x1x8x1224xbf16, #tpu.memory_space<vmem>>, %arg4: memref<8x72xbf16, #tpu.memory_space<vmem>>, %arg5: memref<8x1xf32, #tpu.memory_space<vmem>>, %arg6: memref<1x8x1152xbf16, #tpu.memory_space<vmem>>, %arg7: memref<72x1152xbf16, #tpu.memory_space<vmem>>) attributes {dimension_semantics = [#tpu.dimension_semantics<parallel>, #tpu.dimension_semantics<parallel>, #tpu.dimension_semantics<arbitrary>], iteration_bounds = array<i64: 2, 1, 1>, scalar_prefetch = 0 : i64, scratch_operands = 1 : i64, tpu.core_type = #tpu.core_type<tc>, window_params = [{transform_indices = @transform_0, window_bounds = array<i64: 1, 1, 8, 1224>}, {transform_indices = @transform_1, window_bounds = array<i64: 8, 72>}, {transform_indices = @transform_2, window_bounds = array<i64: 8, 1>}, {transform_indices = @transform_3, window_bounds = array<i64: 1, 8, 1152>}]} {
    %c0_i32 = arith.constant 0 : i32
    %0 = arith.cmpi eq, %arg2, %c0_i32 : i32
    %1 = arith.extui %0 : i1 to i32
    %c0_i32_0 = arith.constant 0 : i32
    %2 = arith.cmpi ne, %1, %c0_i32_0 : i32
    scf.if %2 {
      %c0_10 = arith.constant 0 : index
      %c0_11 = arith.constant 0 : index
      %c0_12 = arith.constant 0 : index
      %c0_13 = arith.constant 0 : index
      %16 = vector.load %arg3[%c0_10, %c0_11, %c0_12, %c0_13] : memref<1x1x8x1224xbf16, #tpu.memory_space<vmem>>, vector<1x1x8x1152xbf16>
      %17 = vector.shape_cast %16 : vector<1x1x8x1152xbf16> to vector<8x1152xbf16>
      %c0_14 = arith.constant 0 : index
      %c0_15 = arith.constant 0 : index
      %18 = vector.load %arg7[%c0_14, %c0_15] : memref<72x1152xbf16, #tpu.memory_space<vmem>>, vector<8x1152xbf16>
      tpu.vector_store %arg7[%c0_14, %c0_15], %17 {strides = array<i32>} : memref<72x1152xbf16, #tpu.memory_space<vmem>>, vector<8x1152xbf16>,
      %c0_16 = arith.constant 0 : index
      %c0_17 = arith.constant 0 : index
      %c0_18 = arith.constant 0 : index
      %c1 = arith.constant 1 : index
      %19 = vector.load %arg3[%c0_16, %c0_17, %c0_18, %c1] : memref<1x1x8x1224xbf16, #tpu.memory_space<vmem>>, vector<1x1x8x1152xbf16>
      %20 = vector.shape_cast %19 : vector<1x1x8x1152xbf16> to vector<8x1152xbf16>
      %c8 = arith.constant 8 : index
      %c0_19 = arith.constant 0 : index
      %21 = vector.load %arg7[%c8, %c0_19] : memref<72x1152xbf16, #tpu.memory_space<vmem>>, vector<8x1152xbf16>
      tpu.vector_store %arg7[%c8, %c0_19], %20 {strides = array<i32>} : memref<72x1152xbf16, #tpu.memory_space<vmem>>, vector<8x1152xbf16>,
      %c0_20 = arith.constant 0 : index
      %c0_21 = arith.constant 0 : index
      %c0_22 = arith.constant 0 : index
      %c2 = arith.constant 2 : index
      %22 = vector.load %arg3[%c0_20, %c0_21, %c0_22, %c2] : memref<1x1x8x1224xbf16, #tpu.memory_space<vmem>>, vector<1x1x8x1152xbf16>
      %23 = vector.shape_cast %22 : vector<1x1x8x1152xbf16> to vector<8x1152xbf16>
      %c16 = arith.constant 16 : index
      %c0_23 = arith.constant 0 : index
      %24 = vector.load %arg7[%c16, %c0_23] : memref<72x1152xbf16, #tpu.memory_space<vmem>>, vector<8x1152xbf16>
      tpu.vector_store %arg7[%c16, %c0_23], %23 {strides = array<i32>} : memref<72x1152xbf16, #tpu.memory_space<vmem>>, vector<8x1152xbf16>,
      %c0_24 = arith.constant 0 : index
      %c0_25 = arith.constant 0 : index
      %c0_26 = arith.constant 0 : index
      %c34 = arith.constant 34 : index
      %25 = vector.load %arg3[%c0_24, %c0_25, %c0_26, %c34] : memref<1x1x8x1224xbf16, #tpu.memory_space<vmem>>, vector<1x1x8x1152xbf16>
      %26 = vector.shape_cast %25 : vector<1x1x8x1152xbf16> to vector<8x1152xbf16>
      %c24 = arith.constant 24 : index
      %c0_27 = arith.constant 0 : index
      %27 = vector.load %arg7[%c24, %c0_27] : memref<72x1152xbf16, #tpu.memory_space<vmem>>, vector<8x1152xbf16>
      tpu.vector_store %arg7[%c24, %c0_27], %26 {strides = array<i32>} : memref<72x1152xbf16, #tpu.memory_space<vmem>>, vector<8x1152xbf16>,
      %c0_28 = arith.constant 0 : index
      %c0_29 = arith.constant 0 : index
      %c0_30 = arith.constant 0 : index
      %c35 = arith.constant 35 : index
      %28 = vector.load %arg3[%c0_28, %c0_29, %c0_30, %c35] : memref<1x1x8x1224xbf16, #tpu.memory_space<vmem>>, vector<1x1x8x1152xbf16>
      %29 = vector.shape_cast %28 : vector<1x1x8x1152xbf16> to vector<8x1152xbf16>
      %c32 = arith.constant 32 : index
      %c0_31 = arith.constant 0 : index
      %30 = vector.load %arg7[%c32, %c0_31] : memref<72x1152xbf16, #tpu.memory_space<vmem>>, vector<8x1152xbf16>
      tpu.vector_store %arg7[%c32, %c0_31], %29 {strides = array<i32>} : memref<72x1152xbf16, #tpu.memory_space<vmem>>, vector<8x1152xbf16>,
      %c0_32 = arith.constant 0 : index
      %c0_33 = arith.constant 0 : index
      %c0_34 = arith.constant 0 : index
      %c36 = arith.constant 36 : index
      %31 = vector.load %arg3[%c0_32, %c0_33, %c0_34, %c36] : memref<1x1x8x1224xbf16, #tpu.memory_space<vmem>>, vector<1x1x8x1152xbf16>
      %32 = vector.shape_cast %31 : vector<1x1x8x1152xbf16> to vector<8x1152xbf16>
      %c40 = arith.constant 40 : index
      %c0_35 = arith.constant 0 : index
      %33 = vector.load %arg7[%c40, %c0_35] : memref<72x1152xbf16, #tpu.memory_space<vmem>>, vector<8x1152xbf16>
      tpu.vector_store %arg7[%c40, %c0_35], %32 {strides = array<i32>} : memref<72x1152xbf16, #tpu.memory_space<vmem>>, vector<8x1152xbf16>,
      %c0_36 = arith.constant 0 : index
      %c0_37 = arith.constant 0 : index
      %c0_38 = arith.constant 0 : index
      %c68 = arith.constant 68 : index
      %34 = vector.load %arg3[%c0_36, %c0_37, %c0_38, %c68] : memref<1x1x8x1224xbf16, #tpu.memory_space<vmem>>, vector<1x1x8x1152xbf16>
      %35 = vector.shape_cast %34 : vector<1x1x8x1152xbf16> to vector<8x1152xbf16>
      %c48 = arith.constant 48 : index
      %c0_39 = arith.constant 0 : index
      %36 = vector.load %arg7[%c48, %c0_39] : memref<72x1152xbf16, #tpu.memory_space<vmem>>, vector<8x1152xbf16>
      tpu.vector_store %arg7[%c48, %c0_39], %35 {strides = array<i32>} : memref<72x1152xbf16, #tpu.memory_space<vmem>>, vector<8x1152xbf16>,
      %c0_40 = arith.constant 0 : index
      %c0_41 = arith.constant 0 : index
      %c0_42 = arith.constant 0 : index
      %c69 = arith.constant 69 : index
      %37 = vector.load %arg3[%c0_40, %c0_41, %c0_42, %c69] : memref<1x1x8x1224xbf16, #tpu.memory_space<vmem>>, vector<1x1x8x1152xbf16>
      %38 = vector.shape_cast %37 : vector<1x1x8x1152xbf16> to vector<8x1152xbf16>
      %c56 = arith.constant 56 : index
      %c0_43 = arith.constant 0 : index
      %39 = vector.load %arg7[%c56, %c0_43] : memref<72x1152xbf16, #tpu.memory_space<vmem>>, vector<8x1152xbf16>
      tpu.vector_store %arg7[%c56, %c0_43], %38 {strides = array<i32>} : memref<72x1152xbf16, #tpu.memory_space<vmem>>, vector<8x1152xbf16>,
      %c0_44 = arith.constant 0 : index
      %c0_45 = arith.constant 0 : index
      %c0_46 = arith.constant 0 : index
      %c70 = arith.constant 70 : index
      %40 = vector.load %arg3[%c0_44, %c0_45, %c0_46, %c70] : memref<1x1x8x1224xbf16, #tpu.memory_space<vmem>>, vector<1x1x8x1152xbf16>
      %41 = vector.shape_cast %40 : vector<1x1x8x1152xbf16> to vector<8x1152xbf16>
      %c64 = arith.constant 64 : index
      %c0_47 = arith.constant 0 : index
      %42 = vector.load %arg7[%c64, %c0_47] : memref<72x1152xbf16, #tpu.memory_space<vmem>>, vector<8x1152xbf16>
      tpu.vector_store %arg7[%c64, %c0_47], %41 {strides = array<i32>} : memref<72x1152xbf16, #tpu.memory_space<vmem>>, vector<8x1152xbf16>,
    } else {
    }
    %c0 = arith.constant 0 : index
    %c0_1 = arith.constant 0 : index
    %3 = vector.load %arg4[%c0, %c0_1] : memref<8x72xbf16, #tpu.memory_space<vmem>>, vector<8x72xbf16>
    %c0_2 = arith.constant 0 : index
    %c0_3 = arith.constant 0 : index
    %4 = vector.load %arg7[%c0_2, %c0_3] : memref<72x1152xbf16, #tpu.memory_space<vmem>>, vector<72x1152xbf16>
    %cst = arith.constant dense<0.000000e+00> : vector<8x1152xf32>
    %5 = tpu.matmul %3, %4, %cst {dimension_numbers = #tpu.dot_dimension_numbers<[1], [0], [0], [1], [0, 0, 1, 1], [], []>} : vector<8x72xbf16>, vector<72x1152xbf16>, vector<8x1152xf32> -> vector<8x1152xf32>
    %c0_4 = arith.constant 0 : index
    %c0_5 = arith.constant 0 : index
    %6 = vector.load %arg5[%c0_4, %c0_5] : memref<8x1xf32, #tpu.memory_space<vmem>>, vector<8x1xf32>
    %7 = vector.broadcast %6 : vector<8x1xf32> to vector<8x1152xf32>
    %8 = arith.addf %5, %7 : vector<8x1152xf32>
    %cst_6 = arith.constant 0.00999999977 : f32
    %9 = vector.broadcast %cst_6 : f32 to vector<8x1152xf32>
    %10 = arith.mulf %8, %9 : vector<8x1152xf32>
    %11 = arith.maximumf %8, %10 : vector<8x1152xf32>
    %12 = arith.truncf %11 : vector<8x1152xf32> to vector<8x1152xbf16>
    %c0_7 = arith.constant 0 : index
    %c0_8 = arith.constant 0 : index
    %c0_9 = arith.constant 0 : index
    %13 = vector.load %arg6[%c0_7, %c0_8, %c0_9] : memref<1x8x1152xbf16, #tpu.memory_space<vmem>>, vector<1x8x1152xbf16>
    %14 = vector.shape_cast %13 : vector<1x8x1152xbf16> to vector<8x1152xbf16>
    %15 = vector.shape_cast %12 : vector<8x1152xbf16> to vector<1x8x1152xbf16>
    tpu.vector_store %arg6[%c0_7, %c0_8, %c0_9], %15 {strides = array<i32>} : memref<1x8x1152xbf16, #tpu.memory_space<vmem>>, vector<1x8x1152xbf16>,
    return
  }
  func.func @transform_0(%arg0: i32, %arg1: i32, %arg2: i32) -> (i32, i32, i32, i32) {
    %c0_i32 = arith.constant 0 : i32
    %c0_i32_0 = arith.constant 0 : i32
    %c0_i32_1 = arith.constant 0 : i32
    return %arg0, %arg1, %c0_i32, %c0_i32_0 : i32, i32, i32, i32
  }
  func.func @transform_1(%arg0: i32, %arg1: i32, %arg2: i32) -> (i32, i32) {
    %c0_i32 = arith.constant 0 : i32
    %c0_i32_0 = arith.constant 0 : i32
    return %arg2, %c0_i32 : i32, i32
  }
  func.func @transform_2(%arg0: i32, %arg1: i32, %arg2: i32) -> (i32, i32) {
    %c0_i32 = arith.constant 0 : i32
    %c0_i32_0 = arith.constant 0 : i32
    return %arg2, %c0_i32 : i32, i32
  }
  func.func @transform_3(%arg0: i32, %arg1: i32, %arg2: i32) -> (i32, i32, i32) {
    %c0_i32 = arith.constant 0 : i32
    return %arg0, %arg2, %arg1 : i32, i32, i32
  }
}

</mosaic_0001>

<llo_original>
// kernel: trans_conv_batch_active.1
$region0: #{trans_conv_batch_active.1}
  #allocation0 [shape = 'u32[]', space=smem, size = 0x4, offset = 0x4, fixed_abs, tag = 'smem constant byte address 0x4 - core index']
  #allocation1 [shape = 'u32[144,128]{1,0:T(1,128)}', space=vmem, size = 0x12000, scoped, tag = 'internal scratch']
  #allocation2 [shape = 'bf16[72,1152]{1,0:T(8,128)(2,1)}', space=vmem, size = 0x28800, scoped, tag = 'scratch operand']
  %s0 = inlined_call_operand.vmem [shape: bf16[2,1,8,1224], index: 0, kind: input, shape index: {}]
  %s1 = inlined_call_operand.vmem [shape: bf16[8,72], index: 1, kind: input, shape index: {}]
  %s2 = inlined_call_operand.vmem [shape: f32[8,1], index: 2, kind: input, shape index: {}]
  %s3 = inlined_call_operand.vmem [shape: bf16[2,8,1152], index: 3, kind: output, shape index: {}]
  %s4 = sld [smem:[#allocation0]]
  $region49: #{trans_conv_batch_active.1} parent=0
    _
  %s6 = ssub.s32 1, %s4
  %s7 = scalar_select 0, %s6, %s4
  loop: start=0, step=1, limit=4
  $region2: #{trans_conv_batch_active.1} parent=0 // loop_pre_header
    _
  $region3: #{trans_conv_batch_active.1} parent=0 // loop_header
    %s9 = sphi 0, %s13
    %p10 = scmp.ge.s32.totalorder %s9, 4
    %s16 = sphi 0, %s35
    %s17 = sphi 0, %s31
    %s18 = sphi 0, %s27
    %s19 = sphi 0, %s16
    %s20 = sphi 0, %s17
    %s21 = sphi 0, %s18
    %s22 = sphi 0, %s19
    %s23 = sphi 0, %s20
    %s24 = sphi 0, %s21
    %s40 = sphi 0, %s42
    %s43 = sphi 0, %s40
    %s44 = sphi 0, %s43
    %s60 = sphi 0, %s44
    %s66 = sphi 0, %s68
    %s69 = sphi 0, %s66
    %s70 = sphi 0, %s69
    %s86 = sphi 0, %s70
    %s92 = sphi 0, %s94
    %s95 = sphi 0, %s92
    %s96 = sphi 0, %s95
    %s112 = sphi 0, %s96
    %s122 = sphi 0, %s124
    %s125 = sphi 0, %s122
    %s126 = sphi 0, %s125
    %s142 = sphi 0, %s126
  $region4: #{trans_conv_batch_active.1} parent=0 // loop_header_branch
    %12 = sbr.rel (%p10) target = $region8
  $region5: #{trans_conv_batch_active.1} parent=0 // loop_body
    %s14 = ssub.s32 %s9, 1
    %s15 = ssub.s32 %s9, 2
    %s25 = sadd.s32 1, %s18
    %p26 = scmp.ge.s32.totalorder %s25, 1
    %s27 = scalar_select %p26, 0, %s25
    %s28 = sadd.s32 1, %s17
    %s29 = scalar_select %p26, %s28, %s17
    %p30 = scmp.ge.s32.totalorder %s29, 1
    %s31 = scalar_select %p30, 0, %s29
    %s32 = sadd.s32 1, %s16
    %s33 = scalar_select %p30, %s32, %s16
    %p34 = scmp.ge.s32.totalorder %s33, 2
    %s35 = scalar_select %p34, 0, %s33
    %s36 = ssub.s32 %s16, %s35
    %s37 = ssub.s32 %s17, %s31
    %s38 = sor.u32 %s36, %s37
    %p39 = scmp.eq.s32.totalorder %s38, 0
    %s41 = sadd.s32 %s40, 1
    %s42 = scalar_select %p39, %s40, %s41
    %p45 = pneg %p39
    %p46 = scmp.eq.s32.totalorder %s9, 1
    %p47 = por %p45, %p46
    %p48 = scmp.ne.s32.totalorder %s40, %s43
    %p49 = scmp.eq.s32.totalorder %s9, 0
    %p50 = por %p48, %p49
    %p51 = scmp.ne.s32.totalorder %s40, %s43
    %p52 = scmp.eq.s32.totalorder %s14, 1
    %p53 = por %p51, %p52
    %p54 = scmp.ne.s32.totalorder %s43, %s44
    %p55 = scmp.eq.s32.totalorder %s14, 0
    %p56 = por %p54, %p55
    %p57 = scmp.ne.s32.totalorder %s43, %s44
    %p58 = scmp.eq.s32.totalorder %s15, 1
    %p59 = por %p57, %p58
    %p61 = scmp.ne.s32.totalorder %s44, %s60
    %p62 = scmp.eq.s32.totalorder %s15, 0
    %p63 = por %p61, %p62
    %s64 = ssub.s32 %s18, %s27
    %p65 = scmp.eq.s32.totalorder %s64, 0
    %s67 = sadd.s32 %s66, 1
    %s68 = scalar_select %p65, %s66, %s67
    %p71 = pneg %p65
    %p72 = scmp.eq.s32.totalorder %s9, 1
    %p73 = por %p71, %p72
    %p74 = scmp.ne.s32.totalorder %s66, %s69
    %p75 = scmp.eq.s32.totalorder %s9, 0
    %p76 = por %p74, %p75
    %p77 = scmp.ne.s32.totalorder %s66, %s69
    %p78 = scmp.eq.s32.totalorder %s14, 1
    %p79 = por %p77, %p78
    %p80 = scmp.ne.s32.totalorder %s69, %s70
    %p81 = scmp.eq.s32.totalorder %s14, 0
    %p82 = por %p80, %p81
    %p83 = scmp.ne.s32.totalorder %s69, %s70
    %p84 = scmp.eq.s32.totalorder %s15, 1
    %p85 = por %p83, %p84
    %p87 = scmp.ne.s32.totalorder %s70, %s86
    %p88 = scmp.eq.s32.totalorder %s15, 0
    %p89 = por %p87, %p88
    %s90 = ssub.s32 %s18, %s27
    %p91 = scmp.eq.s32.totalorder %s90, 0
    %s93 = sadd.s32 %s92, 1
    %s94 = scalar_select %p91, %s92, %s93
    %p97 = pneg %p91
    %p98 = scmp.eq.s32.totalorder %s9, 1
    %p99 = por %p97, %p98
    %p100 = scmp.ne.s32.totalorder %s92, %s95
    %p101 = scmp.eq.s32.totalorder %s9, 0
    %p102 = por %p100, %p101
    %p103 = scmp.ne.s32.totalorder %s92, %s95
    %p104 = scmp.eq.s32.totalorder %s14, 1
    %p105 = por %p103, %p104
    %p106 = scmp.ne.s32.totalorder %s95, %s96
    %p107 = scmp.eq.s32.totalorder %s14, 0
    %p108 = por %p106, %p107
    %p109 = scmp.ne.s32.totalorder %s95, %s96
    %p110 = scmp.eq.s32.totalorder %s15, 1
    %p111 = por %p109, %p110
    %p113 = scmp.ne.s32.totalorder %s96, %s112
    %p114 = scmp.eq.s32.totalorder %s15, 0
    %p115 = por %p113, %p114
    %s116 = ssub.s32 %s16, %s35
    %s117 = ssub.s32 %s18, %s27
    %s118 = sor.u32 %s116, %s117
    %s119 = ssub.s32 %s17, %s31
    %s120 = sor.u32 %s118, %s119
    %p121 = scmp.eq.s32.totalorder %s120, 0
    %s123 = sadd.s32 %s122, 1
    %s124 = scalar_select %p121, %s122, %s123
    %p127 = pneg %p121
    %p128 = scmp.eq.s32.totalorder %s9, 1
    %p129 = por %p127, %p128
    %p130 = scmp.ne.s32.totalorder %s122, %s125
    %p131 = scmp.eq.s32.totalorder %s9, 0
    %p132 = por %p130, %p131
    %p133 = scmp.ne.s32.totalorder %s122, %s125
    %p134 = scmp.eq.s32.totalorder %s14, 1
    %p135 = por %p133, %p134
    %p136 = scmp.ne.s32.totalorder %s125, %s126
    %p137 = scmp.eq.s32.totalorder %s14, 0
    %p138 = por %p136, %p137
    %p139 = scmp.ne.s32.totalorder %s125, %s126
    %p140 = scmp.eq.s32.totalorder %s15, 1
    %p141 = por %p139, %p140
    %p143 = scmp.ne.s32.totalorder %s126, %s142
    %p144 = scmp.eq.s32.totalorder %s15, 0
    %p145 = por %p143, %p144
    %p146 = scmp.le.s32.totalorder 1, %s9
    %p147 = scmp.lt.s32.totalorder %s9, 3
    %p148 = pnand %p146, %p147
    %p149 = pneg %p148
    // Predicated region
    $region9: #{trans_conv_batch_active.1} parent=5 // pred_check
      _
    $region10: #{trans_conv_batch_active.1} parent=5 // pred_check_branch
      %151 = sbr.rel (%p148) target = $region12
    $region11: #{trans_conv_batch_active.1} parent=5 // pred_region
      %s152 = ssub.s32 %s9, 1
      // Predicated region
      $region13: #{trans_conv_batch_active.1} parent=11 // pred_check
        %p153 = pneg %p82
      $region14: #{trans_conv_batch_active.1} parent=11 // pred_check_branch
        %155 = sbr.rel (%p153) target = $region16
      $region15: #{trans_conv_batch_active.1} parent=11 // pred_region
        %p156 = scmp.lt.s32.totalorder %s21, 0
        %s157 = scalar_select %p156, %s21, 0
        %s158 = smul.addr %s157, 4
        %s159 = scalar_lea.vmem %s1, %s158
      $region16: #{trans_conv_batch_active.1} parent=11 // pred_fallthru
        _
      // Predicated region
      $region17: #{trans_conv_batch_active.1} parent=11 // pred_check
        %p160 = pneg %p108
      $region18: #{trans_conv_batch_active.1} parent=11 // pred_check_branch
        %162 = sbr.rel (%p160) target = $region20
      $region19: #{trans_conv_batch_active.1} parent=11 // pred_region
        %p163 = scmp.lt.s32.totalorder %s21, 0
        %s164 = scalar_select %p163, %s21, 0
        %s165 = smul.addr %s164, 8
        %s166 = scalar_lea.vmem %s2, %s165
      $region20: #{trans_conv_batch_active.1} parent=11 // pred_fallthru
        _
    $region12: #{trans_conv_batch_active.1} parent=5 // pred_fallthru
      _
    %p167 = scmp.lt.s32.totalorder %s9, 2
    // Predicated region
    $region21: #{trans_conv_batch_active.1} parent=5 // pred_check
      %p168 = pneg %p167
    $region22: #{trans_conv_batch_active.1} parent=5 // pred_check_branch
      %170 = sbr.rel (%p168) target = $region24
    $region23: #{trans_conv_batch_active.1} parent=5 // pred_region
      // Predicated region
      $region25: #{trans_conv_batch_active.1} parent=23 // pred_check
        %p171 = pneg %p50
      $region26: #{trans_conv_batch_active.1} parent=23 // pred_check_branch
        %173 = sbr.rel (%p171) target = $region28
      $region27: #{trans_conv_batch_active.1} parent=23 // pred_region
        %p174 = scmp.lt.s32.totalorder %s16, 1
        %s175 = scalar_select %p174, %s16, 1
        %p176 = scmp.lt.s32.totalorder %s17, 0
        %s177 = scalar_select %p176, %s17, 0
        %s178 = smul.addr %s177, 10
        %s179 = smul.addr %s175, 10
        %s180 = sadd.s32 %s178, %s179
        %s181 = smul.addr %s180, 4
        %s182 = scalar_lea.vmem %s0, %s181
      $region28: #{trans_conv_batch_active.1} parent=23 // pred_fallthru
        _
    $region24: #{trans_conv_batch_active.1} parent=5 // pred_fallthru
      _
    %p183 = scmp.le.s32.totalorder 1, %s9
    %p184 = scmp.lt.s32.totalorder %s9, 3
    %p185 = pnand %p183, %p184
    %p186 = pneg %p185
    // Predicated region
    $region29: #{trans_conv_batch_active.1} parent=5 // pred_check
      _
    $region30: #{trans_conv_batch_active.1} parent=5 // pred_check_branch
      %188 = sbr.rel (%p185) target = $region32
    $region31: #{trans_conv_batch_active.1} parent=5 // pred_region
      %s189 = ssub.s32 %s9, 1
      %p190 = scmp.lt.s32.totalorder %s19, 1
      %s191 = scalar_select %p190, %s19, 1
      %p192 = scmp.lt.s32.totalorder %s20, 0
      %s193 = scalar_select %p192, %s20, 0
      %s194 = smul.addr %s193, 10
      %s195 = smul.addr %s191, 10
      %s196 = sadd.s32 %s194, %s195
      %s197 = smul.addr %s196, 4
      %s198 = scalar_lea.vmem %s0, %s197
      %p199 = pneg %p56
      %p200 = pneg %p53
      %p201 = scmp.lt.s32.totalorder %s21, 0
      %s202 = scalar_select %p201, %s21, 0
      %s203 = smul.addr %s202, 4
      %s204 = scalar_lea.vmem %s1, %s203
      %p205 = pneg %p82
      %p206 = pneg %p79
      %p207 = scmp.lt.s32.totalorder %s21, 0
      %s208 = scalar_select %p207, %s21, 0
      %s209 = smul.addr %s208, 8
      %s210 = scalar_lea.vmem %s2, %s209
      %p211 = pneg %p108
      %p212 = pneg %p105
      %p213 = pneg %p138
      %p214 = pneg %p135
      %s215 = smul.u32 9, %s20
      %p216 = scmp.lt.s32.totalorder %s19, 1
      %s217 = scalar_select %p216, %s19, 1
      %p218 = scmp.lt.s32.totalorder %s21, 0
      %s219 = scalar_select %p218, %s21, 0
      %p220 = scmp.lt.s32.totalorder %s215, 8
      %s221 = scalar_select %p220, %s215, 8
      %s222 = smul.addr %s219, 9
      %s223 = sadd.s32 %s221, %s222
      %s224 = smul.addr %s217, 9
      %s225 = sadd.s32 %s223, %s224
      %s226 = smul.addr %s225, 4
      %s227 = scalar_lea.vmem %s3, %s226
      %p228 = scmp.lt.s32.totalorder %s19, 1
      %s229 = scalar_select %p228, %s19, 1
      %p230 = scmp.lt.s32.totalorder %s20, 0
      %s231 = scalar_select %p230, %s20, 0
      %s232 = smul.addr %s231, 10
      %s233 = smul.addr %s229, 10
      %s234 = sadd.s32 %s232, %s233
      %s235 = smul.addr %s234, 4
      %s236 = scalar_lea.vmem %s0, %s235
      %p237 = scmp.lt.s32.totalorder %s21, 0
      %s238 = scalar_select %p237, %s21, 0
      %s239 = smul.addr %s238, 4
      %s240 = scalar_lea.vmem %s1, %s239
      %p241 = scmp.lt.s32.totalorder %s21, 0
      %s242 = scalar_select %p241, %s21, 0
      %s243 = smul.addr %s242, 8
      %s244 = scalar_lea.vmem %s2, %s243
      %s245 = smul.u32 9, %s20
      %p246 = scmp.lt.s32.totalorder %s19, 1
      %s247 = scalar_select %p246, %s19, 1
      %p248 = scmp.lt.s32.totalorder %s21, 0
      %s249 = scalar_select %p248, %s21, 0
      %p250 = scmp.lt.s32.totalorder %s245, 8
      %s251 = scalar_select %p250, %s245, 8
      %s252 = smul.addr %s249, 9
      %s253 = sadd.s32 %s251, %s252
      %s254 = smul.addr %s247, 9
      %s255 = sadd.s32 %s253, %s254
      %s256 = smul.addr %s255, 4
      %s257 = scalar_lea.vmem %s3, %s256
      %s258 = smul.u32 9, %s20
      %p260 = scmp.eq.s32.totalorder %s21, 0
      // Predicated region
      $region33: #{trans_conv_batch_active.1} parent=31 // pred_check
        %p261 = pneg %p260
      $region34: #{trans_conv_batch_active.1} parent=31 // pred_check_branch
        %263 = sbr.rel (%p261) target = $region36
      $region35: #{trans_conv_batch_active.1} parent=31 // pred_region
        %v264 = vld [vmem:[%s236] sm:$0xff]
        %v265 = vld [vmem:[%s236 + $0x8] sm:$0xff]
        %v266 = vld [vmem:[%s236 + $0x10] sm:$0xff]
        %v267 = vld [vmem:[%s236 + $0x18] sm:$0xff]
        %v268 = vld [vmem:[%s236 + $0x20] sm:$0xf]
        %269 = vst [vmem:[#allocation2] sm:$0xff] %v264
        %270 = vst [vmem:[#allocation2 + $0x8] sm:$0xff] %v265
        %271 = vst [vmem:[#allocation2 + $0x10] sm:$0xff] %v266
        %272 = vst [vmem:[#allocation2 + $0x18] sm:$0xff] %v267
        %273 = vst [vmem:[#allocation2 + $0x20] sm:$0xf] %v268
        %v274 = vld [vmem:[%s236] sm:$0xff]
        %v275 = vld [vmem:[%s236 + $0x8] sm:$0xff]
        %v276 = vld [vmem:[%s236 + $0x10] sm:$0xff]
        %v277 = vld [vmem:[%s236 + $0x18] sm:$0xff]
        %v278 = vld [vmem:[%s236 + $0x20] sm:$0xff]
        %284 = vrot.lane.b32.xlu0 %v274, 127
        %v285 = vpop.permute.xlu0 %284
        %286 = vrot.lane.b32.xlu0 %v275, 127
        %v287 = vpop.permute.xlu0 %286
        %288 = vrot.lane.b32.xlu0 %v276, 127
        %v289 = vpop.permute.xlu0 %288
        %290 = vrot.lane.b32.xlu0 %v277, 127
        %v291 = vpop.permute.xlu0 %290
        %292 = vrot.lane.b32.xlu0 %v278, 127
        %v293 = vpop.permute.xlu0 %292
        %v294 = vrot.slane %v285, 4
        %v295 = vrot.slane %v287, 4
        %v296 = vrot.slane %v289, 4
        %v297 = vrot.slane %v291, 4
        %v298 = vrot.slane %v293, 4
        %vm299 = vcmask 1043456
        %v300 = vsel %vm299, %v294, %v295
        %vm301 = vcmask 1039360
        %v302 = vsel %vm301, %v285, %v300
        %v303 = vsel %vm299, %v295, %v296
        %v304 = vsel %vm301, %v287, %v303
        %v305 = vsel %vm299, %v296, %v297
        %v306 = vsel %vm301, %v289, %v305
        %v307 = vsel %vm299, %v297, %v298
        %v308 = vsel %vm301, %v291, %v307
        %v309 = vsel %vm301, %v293, %v298
        %315 = vst [vmem:[#allocation2 + $0x24] sm:$0xff] %v302
        %316 = vst [vmem:[#allocation2 + $0x2c] sm:$0xff] %v304
        %317 = vst [vmem:[#allocation2 + $0x34] sm:$0xff] %v306
        %318 = vst [vmem:[#allocation2 + $0x3c] sm:$0xff] %v308
        %319 = vst [vmem:[#allocation2 + $0x44] sm:$0xf] %v309
        %v320 = vld [vmem:[%s236] sm:$0xff]
        %v321 = vld [vmem:[%s236 + $0x8] sm:$0xff]
        %v322 = vld [vmem:[%s236 + $0x10] sm:$0xff]
        %v323 = vld [vmem:[%s236 + $0x18] sm:$0xff]
        %v324 = vld [vmem:[%s236 + $0x20] sm:$0xff]
        %330 = vrot.lane.b32.xlu0 %v320, 126
        %v331 = vpop.permute.xlu0 %330
        %332 = vrot.lane.b32.xlu0 %v321, 126
        %v333 = vpop.permute.xlu0 %332
        %334 = vrot.lane.b32.xlu0 %v322, 126
        %v335 = vpop.permute.xlu0 %334
        %336 = vrot.lane.b32.xlu0 %v323, 126
        %v337 = vpop.permute.xlu0 %336
        %338 = vrot.lane.b32.xlu0 %v324, 126
        %v339 = vpop.permute.xlu0 %338
        %v340 = vrot.slane %v331, 4
        %v341 = vrot.slane %v333, 4
        %v342 = vrot.slane %v335, 4
        %v343 = vrot.slane %v337, 4
        %v344 = vrot.slane %v339, 4
        %v345 = vsel %vm299, %v340, %v341
        %vm346 = vcmask 1031168
        %v347 = vsel %vm346, %v331, %v345
        %v348 = vsel %vm299, %v341, %v342
        %v349 = vsel %vm346, %v333, %v348
        %v350 = vsel %vm299, %v342, %v343
        %v351 = vsel %vm346, %v335, %v350
        %v352 = vsel %vm299, %v343, %v344
        %v353 = vsel %vm346, %v337, %v352
        %v354 = vsel %vm346, %v339, %v344
        %360 = vst [vmem:[#allocation2 + $0x48] sm:$0xff] %v347
        %361 = vst [vmem:[#allocation2 + $0x50] sm:$0xff] %v349
        %362 = vst [vmem:[#allocation2 + $0x58] sm:$0xff] %v351
        %363 = vst [vmem:[#allocation2 + $0x60] sm:$0xff] %v353
        %364 = vst [vmem:[#allocation2 + $0x68] sm:$0xf] %v354
        %v365 = vld [vmem:[%s236] sm:$0xff]
        %v366 = vld [vmem:[%s236 + $0x8] sm:$0xff]
        %v367 = vld [vmem:[%s236 + $0x10] sm:$0xff]
        %v368 = vld [vmem:[%s236 + $0x18] sm:$0xff]
        %v369 = vld [vmem:[%s236 + $0x20] sm:$0xff]
        %375 = vrot.lane.b32.xlu0 %v365, 94
        %v376 = vpop.permute.xlu0 %375
        %377 = vrot.lane.b32.xlu0 %v366, 94
        %v378 = vpop.permute.xlu0 %377
        %379 = vrot.lane.b32.xlu0 %v367, 94
        %v380 = vpop.permute.xlu0 %379
        %381 = vrot.lane.b32.xlu0 %v368, 94
        %v382 = vpop.permute.xlu0 %381
        %383 = vrot.lane.b32.xlu0 %v369, 94
        %v384 = vpop.permute.xlu0 %383
        %v385 = vrot.slane %v376, 4
        %v386 = vrot.slane %v378, 4
        %v387 = vrot.slane %v380, 4
        %v388 = vrot.slane %v382, 4
        %v389 = vrot.slane %v384, 4
        %v390 = vsel %vm299, %v385, %v386
        %vm391 = vcmask 769024
        %v392 = vsel %vm391, %v376, %v390
        %v393 = vsel %vm299, %v386, %v387
        %v394 = vsel %vm391, %v378, %v393
        %v395 = vsel %vm299, %v387, %v388
        %v396 = vsel %vm391, %v380, %v395
        %v397 = vsel %vm299, %v388, %v389
        %v398 = vsel %vm391, %v382, %v397
        %v399 = vsel %vm391, %v384, %v389
        %405 = vst [vmem:[#allocation2 + $0x6c] sm:$0xff] %v392
        %406 = vst [vmem:[#allocation2 + $0x74] sm:$0xff] %v394
        %407 = vst [vmem:[#allocation2 + $0x7c] sm:$0xff] %v396
        %408 = vst [vmem:[#allocation2 + $0x84] sm:$0xff] %v398
        %409 = vst [vmem:[#allocation2 + $0x8c] sm:$0xf] %v399
        %v410 = vld [vmem:[%s236] sm:$0xff]
        %v411 = vld [vmem:[%s236 + $0x8] sm:$0xff]
        %v412 = vld [vmem:[%s236 + $0x10] sm:$0xff]
        %v413 = vld [vmem:[%s236 + $0x18] sm:$0xff]
        %v414 = vld [vmem:[%s236 + $0x20] sm:$0xff]
        %420 = vrot.lane.b32.xlu0 %v410, 93
        %v421 = vpop.permute.xlu0 %420
        %422 = vrot.lane.b32.xlu0 %v411, 93
        %v423 = vpop.permute.xlu0 %422
        %424 = vrot.lane.b32.xlu0 %v412, 93
        %v425 = vpop.permute.xlu0 %424
        %426 = vrot.lane.b32.xlu0 %v413, 93
        %v427 = vpop.permute.xlu0 %426
        %428 = vrot.lane.b32.xlu0 %v414, 93
        %v429 = vpop.permute.xlu0 %428
        %v430 = vrot.slane %v421, 4
        %v431 = vrot.slane %v423, 4
        %v432 = vrot.slane %v425, 4
        %v433 = vrot.slane %v427, 4
        %v434 = vrot.slane %v429, 4
        %v435 = vsel %vm299, %v430, %v431
        %vm436 = vcmask 760832
        %v437 = vsel %vm436, %v421, %v435
        %v438 = vsel %vm299, %v431, %v432
        %v439 = vsel %vm436, %v423, %v438
        %v440 = vsel %vm299, %v432, %v433
        %v441 = vsel %vm436, %v425, %v440
        %v442 = vsel %vm299, %v433, %v434
        %v443 = vsel %vm436, %v427, %v442
        %v444 = vsel %vm436, %v429, %v434
        %450 = vst [vmem:[#allocation2 + $0x90] sm:$0xff] %v437
        %451 = vst [vmem:[#allocation2 + $0x98] sm:$0xff] %v439
        %452 = vst [vmem:[#allocation2 + $0xa0] sm:$0xff] %v441
        %453 = vst [vmem:[#allocation2 + $0xa8] sm:$0xff] %v443
        %454 = vst [vmem:[#allocation2 + $0xb0] sm:$0xf] %v444
        %v455 = vld [vmem:[%s236] sm:$0xff]
        %v456 = vld [vmem:[%s236 + $0x8] sm:$0xff]
        %v457 = vld [vmem:[%s236 + $0x10] sm:$0xff]
        %v458 = vld [vmem:[%s236 + $0x18] sm:$0xff]
        %v459 = vld [vmem:[%s236 + $0x20] sm:$0xff]
        %465 = vrot.lane.b32.xlu0 %v455, 92
        %v466 = vpop.permute.xlu0 %465
        %467 = vrot.lane.b32.xlu0 %v456, 92
        %v468 = vpop.permute.xlu0 %467
        %469 = vrot.lane.b32.xlu0 %v457, 92
        %v470 = vpop.permute.xlu0 %469
        %471 = vrot.lane.b32.xlu0 %v458, 92
        %v472 = vpop.permute.xlu0 %471
        %473 = vrot.lane.b32.xlu0 %v459, 92
        %v474 = vpop.permute.xlu0 %473
        %v475 = vrot.slane %v466, 4
        %v476 = vrot.slane %v468, 4
        %v477 = vrot.slane %v470, 4
        %v478 = vrot.slane %v472, 4
        %v479 = vrot.slane %v474, 4
        %v480 = vsel %vm299, %v475, %v476
        %vm481 = vcmask 752640
        %v482 = vsel %vm481, %v466, %v480
        %v483 = vsel %vm299, %v476, %v477
        %v484 = vsel %vm481, %v468, %v483
        %v485 = vsel %vm299, %v477, %v478
        %v486 = vsel %vm481, %v470, %v485
        %v487 = vsel %vm299, %v478, %v479
        %v488 = vsel %vm481, %v472, %v487
        %v489 = vsel %vm481, %v474, %v479
        %495 = vst [vmem:[#allocation2 + $0xb4] sm:$0xff] %v482
        %496 = vst [vmem:[#allocation2 + $0xbc] sm:$0xff] %v484
        %497 = vst [vmem:[#allocation2 + $0xc4] sm:$0xff] %v486
        %498 = vst [vmem:[#allocation2 + $0xcc] sm:$0xff] %v488
        %499 = vst [vmem:[#allocation2 + $0xd4] sm:$0xf] %v489
        %v500 = vld [vmem:[%s236] sm:$0xff]
        %v501 = vld [vmem:[%s236 + $0x8] sm:$0xff]
        %v502 = vld [vmem:[%s236 + $0x10] sm:$0xff]
        %v503 = vld [vmem:[%s236 + $0x18] sm:$0xff]
        %v504 = vld [vmem:[%s236 + $0x20] sm:$0xff]
        %510 = vrot.lane.b32.xlu0 %v500, 60
        %v511 = vpop.permute.xlu0 %510
        %512 = vrot.lane.b32.xlu0 %v501, 60
        %v513 = vpop.permute.xlu0 %512
        %514 = vrot.lane.b32.xlu0 %v502, 60
        %v515 = vpop.permute.xlu0 %514
        %516 = vrot.lane.b32.xlu0 %v503, 60
        %v517 = vpop.permute.xlu0 %516
        %518 = vrot.lane.b32.xlu0 %v504, 60
        %v519 = vpop.permute.xlu0 %518
        %v520 = vrot.slane %v511, 4
        %v521 = vrot.slane %v513, 4
        %v522 = vrot.slane %v515, 4
        %v523 = vrot.slane %v517, 4
        %v524 = vrot.slane %v519, 4
        %v525 = vsel %vm299, %v520, %v521
        %vm526 = vcmask 490496
        %v527 = vsel %vm526, %v511, %v525
        %v528 = vsel %vm299, %v521, %v522
        %v529 = vsel %vm526, %v513, %v528
        %v530 = vsel %vm299, %v522, %v523
        %v531 = vsel %vm526, %v515, %v530
        %v532 = vsel %vm299, %v523, %v524
        %v533 = vsel %vm526, %v517, %v532
        %v534 = vsel %vm526, %v519, %v524
        %540 = vst [vmem:[#allocation2 + $0xd8] sm:$0xff] %v527
        %541 = vst [vmem:[#allocation2 + $0xe0] sm:$0xff] %v529
        %542 = vst [vmem:[#allocation2 + $0xe8] sm:$0xff] %v531
        %543 = vst [vmem:[#allocation2 + $0xf0] sm:$0xff] %v533
        %544 = vst [vmem:[#allocation2 + $0xf8] sm:$0xf] %v534
        %v545 = vld [vmem:[%s236] sm:$0xff]
        %v546 = vld [vmem:[%s236 + $0x8] sm:$0xff]
        %v547 = vld [vmem:[%s236 + $0x10] sm:$0xff]
        %v548 = vld [vmem:[%s236 + $0x18] sm:$0xff]
        %v549 = vld [vmem:[%s236 + $0x20] sm:$0xff]
        %555 = vrot.lane.b32.xlu0 %v545, 59
        %v556 = vpop.permute.xlu0 %555
        %557 = vrot.lane.b32.xlu0 %v546, 59
        %v558 = vpop.permute.xlu0 %557
        %559 = vrot.lane.b32.xlu0 %v547, 59
        %v560 = vpop.permute.xlu0 %559
        %561 = vrot.lane.b32.xlu0 %v548, 59
        %v562 = vpop.permute.xlu0 %561
        %563 = vrot.lane.b32.xlu0 %v549, 59
        %v564 = vpop.permute.xlu0 %563
        %v565 = vrot.slane %v556, 4
        %v566 = vrot.slane %v558, 4
        %v567 = vrot.slane %v560, 4
        %v568 = vrot.slane %v562, 4
        %v569 = vrot.slane %v564, 4
        %v570 = vsel %vm299, %v565, %v566
        %vm571 = vcmask 482304
        %v572 = vsel %vm571, %v556, %v570
        %v573 = vsel %vm299, %v566, %v567
        %v574 = vsel %vm571, %v558, %v573
        %v575 = vsel %vm299, %v567, %v568
        %v576 = vsel %vm571, %v560, %v575
        %v577 = vsel %vm299, %v568, %v569
        %v578 = vsel %vm571, %v562, %v577
        %v579 = vsel %vm571, %v564, %v569
        %585 = vst [vmem:[#allocation2 + $0xfc] sm:$0xff] %v572
        %586 = vst [vmem:[#allocation2 + $0x104] sm:$0xff] %v574
        %587 = vst [vmem:[#allocation2 + $0x10c] sm:$0xff] %v576
        %588 = vst [vmem:[#allocation2 + $0x114] sm:$0xff] %v578
        %589 = vst [vmem:[#allocation2 + $0x11c] sm:$0xf] %v579
        %v590 = vld [vmem:[%s236] sm:$0xff]
        %v591 = vld [vmem:[%s236 + $0x8] sm:$0xff]
        %v592 = vld [vmem:[%s236 + $0x10] sm:$0xff]
        %v593 = vld [vmem:[%s236 + $0x18] sm:$0xff]
        %v594 = vld [vmem:[%s236 + $0x20] sm:$0xff]
        %600 = vrot.lane.b32.xlu0 %v590, 58
        %v601 = vpop.permute.xlu0 %600
        %602 = vrot.lane.b32.xlu0 %v591, 58
        %v603 = vpop.permute.xlu0 %602
        %604 = vrot.lane.b32.xlu0 %v592, 58
        %v605 = vpop.permute.xlu0 %604
        %606 = vrot.lane.b32.xlu0 %v593, 58
        %v607 = vpop.permute.xlu0 %606
        %608 = vrot.lane.b32.xlu0 %v594, 58
        %v609 = vpop.permute.xlu0 %608
        %v610 = vrot.slane %v601, 4
        %v611 = vrot.slane %v603, 4
        %v612 = vrot.slane %v605, 4
        %v613 = vrot.slane %v607, 4
        %v614 = vrot.slane %v609, 4
        %v615 = vsel %vm299, %v610, %v611
        %vm616 = vcmask 474112
        %v617 = vsel %vm616, %v601, %v615
        %v618 = vsel %vm299, %v611, %v612
        %v619 = vsel %vm616, %v603, %v618
        %v620 = vsel %vm299, %v612, %v613
        %v621 = vsel %vm616, %v605, %v620
        %v622 = vsel %vm299, %v613, %v614
        %v623 = vsel %vm616, %v607, %v622
        %v624 = vsel %vm616, %v609, %v614
        %630 = vst [vmem:[#allocation2 + $0x120] sm:$0xff] %v617
        %631 = vst [vmem:[#allocation2 + $0x128] sm:$0xff] %v619
        %632 = vst [vmem:[#allocation2 + $0x130] sm:$0xff] %v621
        %633 = vst [vmem:[#allocation2 + $0x138] sm:$0xff] %v623
        %634 = vst [vmem:[#allocation2 + $0x140] sm:$0xf] %v624
      $region36: #{trans_conv_batch_active.1} parent=31 // pred_fallthru
        _
      %v635 = vld [vmem:[%s240] sm:$0xf]
      %v636 = vld [vmem:[#allocation2] sm:$0xff]
      %v637 = vld [vmem:[#allocation2 + $0x8] sm:$0xff]
      %v638 = vld [vmem:[#allocation2 + $0x10] sm:$0xff]
      %v639 = vld [vmem:[#allocation2 + $0x18] sm:$0xff]
      %v640 = vld [vmem:[#allocation2 + $0x20] sm:$0xf]
      %v641 = vld [vmem:[#allocation2 + $0x24] sm:$0xff]
      %v642 = vld [vmem:[#allocation2 + $0x2c] sm:$0xff]
      %v643 = vld [vmem:[#allocation2 + $0x34] sm:$0xff]
      %v644 = vld [vmem:[#allocation2 + $0x3c] sm:$0xff]
      %v645 = vld [vmem:[#allocation2 + $0x44] sm:$0xf]
      %v646 = vld [vmem:[#allocation2 + $0x48] sm:$0xff]
      %v647 = vld [vmem:[#allocation2 + $0x50] sm:$0xff]
      %v648 = vld [vmem:[#allocation2 + $0x58] sm:$0xff]
      %v649 = vld [vmem:[#allocation2 + $0x60] sm:$0xff]
      %v650 = vld [vmem:[#allocation2 + $0x68] sm:$0xf]
      %v651 = vld [vmem:[#allocation2 + $0x6c] sm:$0xff]
      %v652 = vld [vmem:[#allocation2 + $0x74] sm:$0xff]
      %v653 = vld [vmem:[#allocation2 + $0x7c] sm:$0xff]
      %v654 = vld [vmem:[#allocation2 + $0x84] sm:$0xff]
      %v655 = vld [vmem:[#allocation2 + $0x8c] sm:$0xf]
      %v656 = vld [vmem:[#allocation2 + $0x90] sm:$0xff]
      %v657 = vld [vmem:[#allocation2 + $0x98] sm:$0xff]
      %v658 = vld [vmem:[#allocation2 + $0xa0] sm:$0xff]
      %v659 = vld [vmem:[#allocation2 + $0xa8] sm:$0xff]
      %v660 = vld [vmem:[#allocation2 + $0xb0] sm:$0xf]
      %v661 = vld [vmem:[#allocation2 + $0xb4] sm:$0xff]
      %v662 = vld [vmem:[#allocation2 + $0xbc] sm:$0xff]
      %v663 = vld [vmem:[#allocation2 + $0xc4] sm:$0xff]
      %v664 = vld [vmem:[#allocation2 + $0xcc] sm:$0xff]
      %v665 = vld [vmem:[#allocation2 + $0xd4] sm:$0xf]
      %v666 = vld [vmem:[#allocation2 + $0xd8] sm:$0xff]
      %v667 = vld [vmem:[#allocation2 + $0xe0] sm:$0xff]
      %v668 = vld [vmem:[#allocation2 + $0xe8] sm:$0xff]
      %v669 = vld [vmem:[#allocation2 + $0xf0] sm:$0xff]
      %v670 = vld [vmem:[#allocation2 + $0xf8] sm:$0xf]
      %v671 = vld [vmem:[#allocation2 + $0xfc] sm:$0xff]
      %v672 = vld [vmem:[#allocation2 + $0x104] sm:$0xff]
      %v673 = vld [vmem:[#allocation2 + $0x10c] sm:$0xff]
      %v674 = vld [vmem:[#allocation2 + $0x114] sm:$0xff]
      %v675 = vld [vmem:[#allocation2 + $0x11c] sm:$0xf]
      %v676 = vld [vmem:[#allocation2 + $0x120] sm:$0xff]
      %v677 = vld [vmem:[#allocation2 + $0x128] sm:$0xff]
      %v678 = vld [vmem:[#allocation2 + $0x130] sm:$0xff]
      %v679 = vld [vmem:[#allocation2 + $0x138] sm:$0xff]
      %v680 = vld [vmem:[#allocation2 + $0x140] sm:$0xf]
      %v681 = vld [vmem:[%s244] sm:$0xff]
      %683 = vset.pattern.permute.xlu0 0
      %684 = vperm.xlu0 %683, %v681
      %v685 = vpop.permute.xlu0 %684
      %v732 = vunpack.c.l.b16 %v636
      %v733 = vunpack.c.h.b16 %v636
      %v734 = vunpack.c.l.b16 %v637
      %v735 = vunpack.c.h.b16 %v637
      %v736 = vunpack.c.l.b16 %v638
      %v737 = vunpack.c.h.b16 %v638
      %v738 = vunpack.c.l.b16 %v639
      %v739 = vunpack.c.h.b16 %v639
      %v740 = vunpack.c.l.b16 %v640
      %v741 = vunpack.c.l.b16 %v641
      %v742 = vunpack.c.h.b16 %v641
      %v743 = vunpack.c.l.b16 %v642
      %v744 = vunpack.c.h.b16 %v642
      %v745 = vunpack.c.l.b16 %v643
      %v746 = vunpack.c.h.b16 %v643
      %v747 = vunpack.c.l.b16 %v644
      %v748 = vunpack.c.h.b16 %v644
      %v749 = vunpack.c.l.b16 %v645
      %v750 = vunpack.c.l.b16 %v646
      %v751 = vunpack.c.h.b16 %v646
      %v752 = vunpack.c.l.b16 %v647
      %v753 = vunpack.c.h.b16 %v647
      %v754 = vunpack.c.l.b16 %v648
      %v755 = vunpack.c.h.b16 %v648
      %v756 = vunpack.c.l.b16 %v649
      %v757 = vunpack.c.h.b16 %v649
      %v758 = vunpack.c.l.b16 %v650
      %v759 = vunpack.c.l.b16 %v651
      %v760 = vunpack.c.h.b16 %v651
      %v761 = vunpack.c.l.b16 %v652
      %v762 = vunpack.c.h.b16 %v652
      %v763 = vunpack.c.l.b16 %v653
      %v764 = vunpack.c.h.b16 %v653
      %v765 = vunpack.c.l.b16 %v654
      %v766 = vunpack.c.h.b16 %v654
      %v767 = vunpack.c.l.b16 %v655
      %v768 = vunpack.c.l.b16 %v656
      %v769 = vunpack.c.h.b16 %v656
      %v770 = vunpack.c.l.b16 %v657
      %v771 = vunpack.c.h.b16 %v657
      %v772 = vunpack.c.l.b16 %v658
      %v773 = vunpack.c.h.b16 %v658
      %v774 = vunpack.c.l.b16 %v659
      %v775 = vunpack.c.h.b16 %v659
      %v776 = vunpack.c.l.b16 %v660
      %v777 = vunpack.c.l.b16 %v661
      %v778 = vunpack.c.h.b16 %v661
      %v779 = vunpack.c.l.b16 %v662
      %v780 = vunpack.c.h.b16 %v662
      %v781 = vunpack.c.l.b16 %v663
      %v782 = vunpack.c.h.b16 %v663
      %v783 = vunpack.c.l.b16 %v664
      %v784 = vunpack.c.h.b16 %v664
      %v785 = vunpack.c.l.b16 %v665
      %v786 = vunpack.c.l.b16 %v666
      %v787 = vunpack.c.h.b16 %v666
      %v788 = vunpack.c.l.b16 %v667
      %v789 = vunpack.c.h.b16 %v667
      %v790 = vunpack.c.l.b16 %v668
      %v791 = vunpack.c.h.b16 %v668
      %v792 = vunpack.c.l.b16 %v669
      %v793 = vunpack.c.h.b16 %v669
      %v794 = vunpack.c.l.b16 %v670
      %v795 = vunpack.c.l.b16 %v671
      %v796 = vunpack.c.h.b16 %v671
      %v797 = vunpack.c.l.b16 %v672
      %v798 = vunpack.c.h.b16 %v672
      %v799 = vunpack.c.l.b16 %v673
      %v800 = vunpack.c.h.b16 %v673
      %v801 = vunpack.c.l.b16 %v674
      %v802 = vunpack.c.h.b16 %v674
      %v803 = vunpack.c.l.b16 %v675
      %v804 = vunpack.c.l.b16 %v676
      %v805 = vunpack.c.h.b16 %v676
      %v806 = vunpack.c.l.b16 %v677
      %v807 = vunpack.c.h.b16 %v677
      %v808 = vunpack.c.l.b16 %v678
      %v809 = vunpack.c.h.b16 %v678
      %v810 = vunpack.c.l.b16 %v679
      %v811 = vunpack.c.h.b16 %v679
      %v812 = vunpack.c.l.b16 %v680
      %v813 = vpack.c.b16 %v741, %v732
      %v814 = vpack.c.b16 %v742, %v733
      %v815 = vpack.c.b16 %v743, %v734
      %v816 = vpack.c.b16 %v744, %v735
      %v817 = vpack.c.b16 %v745, %v736
      %v818 = vpack.c.b16 %v746, %v737
      %v819 = vpack.c.b16 %v747, %v738
      %v820 = vpack.c.b16 %v748, %v739
      %v821 = vpack.c.b16 %v749, %v740
      %v822 = vpack.c.b16 %v759, %v750
      %v823 = vpack.c.b16 %v760, %v751
      %v824 = vpack.c.b16 %v761, %v752
      %v825 = vpack.c.b16 %v762, %v753
      %v826 = vpack.c.b16 %v763, %v754
      %v827 = vpack.c.b16 %v764, %v755
      %v828 = vpack.c.b16 %v765, %v756
      %v829 = vpack.c.b16 %v766, %v757
      %v830 = vpack.c.b16 %v767, %v758
      %v831 = vpack.c.b16 %v777, %v768
      %v832 = vpack.c.b16 %v778, %v769
      %v833 = vpack.c.b16 %v779, %v770
      %v834 = vpack.c.b16 %v780, %v771
      %v835 = vpack.c.b16 %v781, %v772
      %v836 = vpack.c.b16 %v782, %v773
      %v837 = vpack.c.b16 %v783, %v774
      %v838 = vpack.c.b16 %v784, %v775
      %v839 = vpack.c.b16 %v785, %v776
      %v840 = vpack.c.b16 %v795, %v786
      %v841 = vpack.c.b16 %v796, %v787
      %v842 = vpack.c.b16 %v797, %v788
      %v843 = vpack.c.b16 %v798, %v789
      %v844 = vpack.c.b16 %v799, %v790
      %v845 = vpack.c.b16 %v800, %v791
      %v846 = vpack.c.b16 %v801, %v792
      %v847 = vpack.c.b16 %v802, %v793
      %v848 = vpack.c.b16 %v803, %v794
      %v849 = vpack.c.b16 %v804, %v804
      %v850 = vpack.c.b16 %v805, %v805
      %v851 = vpack.c.b16 %v806, %v806
      %v852 = vpack.c.b16 %v807, %v807
      %v853 = vpack.c.b16 %v808, %v808
      %v854 = vpack.c.b16 %v809, %v809
      %v855 = vpack.c.b16 %v810, %v810
      %v856 = vpack.c.b16 %v811, %v811
      %v857 = vpack.c.b16 %v812, %v812
      %vm894 = vcmask 588800
      %v896 = vsel %vm894, %v635, 0
      %vm898 = vcmask 1043456
      %v900 = vsel %vm898, %v849, 0
      %v903 = vsel %vm898, %v850, 0
      %v906 = vsel %vm898, %v851, 0
      %v909 = vsel %vm898, %v852, 0
      %v912 = vsel %vm898, %v853, 0
      %v915 = vsel %vm898, %v854, 0
      %v918 = vsel %vm898, %v855, 0
      %v921 = vsel %vm898, %v856, 0
      %v924 = vsel %vm898, %v857, 0
      %926 = vmatprep.subr.bf16.mxu0 %v814
      %927 = vmatpush1.bf16.msra.mxu0 %v813
      %928 = vmatprep.subr.bf16.mxu0 %v823
      %929 = vmatpush1.bf16.msra.mxu0 %v822
      %930 = vmatprep.subr.bf16.mxu0 %v832
      %931 = vmatpush1.bf16.msra.mxu0 %v831
      %932 = vmatprep.subr.bf16.mxu0 %v841
      %933 = vmatpush1.bf16.msra.mxu0 %v840
      %934 = vmatprep.subr.bf16.mxu0 %v903
      %935 = vmatpush1.bf16.msra.mxu0 %v900
      %936 = vmatprep.subr.bf16.mxu0 0
      %937 = vmatpush1.bf16.msra.mxu0 0
      %938 = vmatprep.subr.bf16.mxu0 0
      %939 = vmatpush1.bf16.msra.mxu0 0
      %940 = vmatprep.subr.bf16.mxu0 0
      %941 = vmatpush1.bf16.msra.mxu0 0
      %942 = vmatprep.subr.bf16.mxu0 0
      %943 = vmatpush1.bf16.msra.mxu0 0
      %944 = vmatprep.subr.bf16.mxu0 0
      %945 = vmatpush1.bf16.msra.mxu0 0
      %946 = vmatprep.subr.bf16.mxu0 0
      %947 = vmatpush1.bf16.msra.mxu0 0
      %948 = vmatprep.subr.bf16.mxu0 0
      %949 = vmatpush1.bf16.msra.mxu0 0
      %950 = vmatprep.subr.bf16.mxu0 0
      %951 = vmatpush1.bf16.msra.mxu0 0
      %952 = vmatprep.subr.bf16.mxu0 0
      %953 = vmatpush1.bf16.msra.mxu0 0
      %954 = vmatprep.subr.bf16.mxu0 0
      %955 = vmatpush1.bf16.msra.mxu0 0
      %956 = vmatprep.subr.bf16.mxu0 0
      %957 = vmatpush1.bf16.msra.mxu0 0
      %958 = vmatprep.mubr.bf16.mxu0 0
      %959 = vmatmul.mubr.bf16.gmra.mrb[0].mxu0 %v896
      %v960 = vpop.f32.mrb[0].mxu0
      %v961 = vadd.f32 %v685, %v960
      %v962 = vpop.f32.mrb[0].mxu0
      %v963 = vadd.f32 %v685, %v962
      %v964 = vpop.f32.mrb[0].mxu0
      %v965 = vpop.f32.mrb[0].mxu0
      %966 = vdwg.mxu0
      %967 = vmatprep.subr.bf16.mxu0 %v816
      %968 = vmatpush1.bf16.msra.mxu0 %v815
      %969 = vmatprep.subr.bf16.mxu0 %v825
      %970 = vmatpush1.bf16.msra.mxu0 %v824
      %971 = vmatprep.subr.bf16.mxu0 %v834
      %972 = vmatpush1.bf16.msra.mxu0 %v833
      %973 = vmatprep.subr.bf16.mxu0 %v843
      %974 = vmatpush1.bf16.msra.mxu0 %v842
      %975 = vmatprep.subr.bf16.mxu0 %v909
      %976 = vmatpush1.bf16.msra.mxu0 %v906
      %977 = vmatprep.subr.bf16.mxu0 0
      %978 = vmatpush1.bf16.msra.mxu0 0
      %979 = vmatprep.subr.bf16.mxu0 0
      %980 = vmatpush1.bf16.msra.mxu0 0
      %981 = vmatprep.subr.bf16.mxu0 0
      %982 = vmatpush1.bf16.msra.mxu0 0
      %983 = vmatprep.subr.bf16.mxu0 0
      %984 = vmatpush1.bf16.msra.mxu0 0
      %985 = vmatprep.subr.bf16.mxu0 0
      %986 = vmatpush1.bf16.msra.mxu0 0
      %987 = vmatprep.subr.bf16.mxu0 0
      %988 = vmatpush1.bf16.msra.mxu0 0
      %989 = vmatprep.subr.bf16.mxu0 0
      %990 = vmatpush1.bf16.msra.mxu0 0
      %991 = vmatprep.subr.bf16.mxu0 0
      %992 = vmatpush1.bf16.msra.mxu0 0
      %993 = vmatprep.subr.bf16.mxu0 0
      %994 = vmatpush1.bf16.msra.mxu0 0
      %995 = vmatprep.subr.bf16.mxu0 0
      %996 = vmatpush1.bf16.msra.mxu0 0
      %997 = vmatprep.subr.bf16.mxu0 0
      %998 = vmatpush1.bf16.msra.mxu0 0
      %999 = vmatprep.mubr.bf16.mxu0 0
      %1000 = vmatmul.mubr.bf16.gmra.mrb[0].mxu0 %v896
      %v1001 = vpop.f32.mrb[0].mxu0
      %v1002 = vadd.f32 %v685, %v1001
      %v1003 = vpop.f32.mrb[0].mxu0
      %v1004 = vadd.f32 %v685, %v1003
      %v1005 = vpop.f32.mrb[0].mxu0
      %v1006 = vpop.f32.mrb[0].mxu0
      %1007 = vdwg.mxu0
      %1008 = vmatprep.subr.bf16.mxu0 %v818
      %1009 = vmatpush1.bf16.msra.mxu0 %v817
      %1010 = vmatprep.subr.bf16.mxu0 %v827
      %1011 = vmatpush1.bf16.msra.mxu0 %v826
      %1012 = vmatprep.subr.bf16.mxu0 %v836
      %1013 = vmatpush1.bf16.msra.mxu0 %v835
      %1014 = vmatprep.subr.bf16.mxu0 %v845
      %1015 = vmatpush1.bf16.msra.mxu0 %v844
      %1016 = vmatprep.subr.bf16.mxu0 %v915
      %1017 = vmatpush1.bf16.msra.mxu0 %v912
      %1018 = vmatprep.subr.bf16.mxu0 0
      %1019 = vmatpush1.bf16.msra.mxu0 0
      %1020 = vmatprep.subr.bf16.mxu0 0
      %1021 = vmatpush1.bf16.msra.mxu0 0
      %1022 = vmatprep.subr.bf16.mxu0 0
      %1023 = vmatpush1.bf16.msra.mxu0 0
      %1024 = vmatprep.subr.bf16.mxu0 0
      %1025 = vmatpush1.bf16.msra.mxu0 0
      %1026 = vmatprep.subr.bf16.mxu0 0
      %1027 = vmatpush1.bf16.msra.mxu0 0
      %1028 = vmatprep.subr.bf16.mxu0 0
      %1029 = vmatpush1.bf16.msra.mxu0 0
      %1030 = vmatprep.subr.bf16.mxu0 0
      %1031 = vmatpush1.bf16.msra.mxu0 0
      %1032 = vmatprep.subr.bf16.mxu0 0
      %1033 = vmatpush1.bf16.msra.mxu0 0
      %1034 = vmatprep.subr.bf16.mxu0 0
      %1035 = vmatpush1.bf16.msra.mxu0 0
      %1036 = vmatprep.subr.bf16.mxu0 0
      %1037 = vmatpush1.bf16.msra.mxu0 0
      %1038 = vmatprep.subr.bf16.mxu0 0
      %1039 = vmatpush1.bf16.msra.mxu0 0
      %1040 = vmatprep.mubr.bf16.mxu0 0
      %1041 = vmatmul.mubr.bf16.gmra.mrb[0].mxu0 %v896
      %v1042 = vpop.f32.mrb[0].mxu0
      %v1043 = vadd.f32 %v685, %v1042
      %v1044 = vpop.f32.mrb[0].mxu0
      %v1045 = vadd.f32 %v685, %v1044
      %v1046 = vpop.f32.mrb[0].mxu0
      %v1047 = vpop.f32.mrb[0].mxu0
      %1048 = vdwg.mxu0
      %1049 = vmatprep.subr.bf16.mxu0 %v820
      %1050 = vmatpush1.bf16.msra.mxu0 %v819
      %1051 = vmatprep.subr.bf16.mxu0 %v829
      %1052 = vmatpush1.bf16.msra.mxu0 %v828
      %1053 = vmatprep.subr.bf16.mxu0 %v838
      %1054 = vmatpush1.bf16.msra.mxu0 %v837
      %1055 = vmatprep.subr.bf16.mxu0 %v847
      %1056 = vmatpush1.bf16.msra.mxu0 %v846
      %1057 = vmatprep.subr.bf16.mxu0 %v921
      %1058 = vmatpush1.bf16.msra.mxu0 %v918
      %1059 = vmatprep.subr.bf16.mxu0 0
      %1060 = vmatpush1.bf16.msra.mxu0 0
      %1061 = vmatprep.subr.bf16.mxu0 0
      %1062 = vmatpush1.bf16.msra.mxu0 0
      %1063 = vmatprep.subr.bf16.mxu0 0
      %1064 = vmatpush1.bf16.msra.mxu0 0
      %1065 = vmatprep.subr.bf16.mxu0 0
      %1066 = vmatpush1.bf16.msra.mxu0 0
      %1067 = vmatprep.subr.bf16.mxu0 0
      %1068 = vmatpush1.bf16.msra.mxu0 0
      %1069 = vmatprep.subr.bf16.mxu0 0
      %1070 = vmatpush1.bf16.msra.mxu0 0
      %1071 = vmatprep.subr.bf16.mxu0 0
      %1072 = vmatpush1.bf16.msra.mxu0 0
      %1073 = vmatprep.subr.bf16.mxu0 0
      %1074 = vmatpush1.bf16.msra.mxu0 0
      %1075 = vmatprep.subr.bf16.mxu0 0
      %1076 = vmatpush1.bf16.msra.mxu0 0
      %1077 = vmatprep.subr.bf16.mxu0 0
      %1078 = vmatpush1.bf16.msra.mxu0 0
      %1079 = vmatprep.subr.bf16.mxu0 0
      %1080 = vmatpush1.bf16.msra.mxu0 0
      %1081 = vmatprep.mubr.bf16.mxu0 0
      %1082 = vmatmul.mubr.bf16.gmra.mrb[0].mxu0 %v896
      %v1083 = vpop.f32.mrb[0].mxu0
      %v1084 = vadd.f32 %v685, %v1083
      %v1085 = vpop.f32.mrb[0].mxu0
      %v1086 = vadd.f32 %v685, %v1085
      %v1087 = vpop.f32.mrb[0].mxu0
      %v1088 = vpop.f32.mrb[0].mxu0
      %1089 = vdwg.mxu0
      %1090 = vmatprep.subr.bf16.mxu0 0
      %1091 = vmatpush1.bf16.msra.mxu0 %v821
      %1092 = vmatprep.subr.bf16.mxu0 0
      %1093 = vmatpush1.bf16.msra.mxu0 %v830
      %1094 = vmatprep.subr.bf16.mxu0 0
      %1095 = vmatpush1.bf16.msra.mxu0 %v839
      %1096 = vmatprep.subr.bf16.mxu0 0
      %1097 = vmatpush1.bf16.msra.mxu0 %v848
      %1098 = vmatprep.subr.bf16.mxu0 0
      %1099 = vmatpush1.bf16.msra.mxu0 %v924
      %1100 = vmatprep.subr.bf16.mxu0 0
      %1101 = vmatpush1.bf16.msra.mxu0 0
      %1102 = vmatprep.subr.bf16.mxu0 0
      %1103 = vmatpush1.bf16.msra.mxu0 0
      %1104 = vmatprep.subr.bf16.mxu0 0
      %1105 = vmatpush1.bf16.msra.mxu0 0
      %1106 = vmatprep.subr.bf16.mxu0 0
      %1107 = vmatpush1.bf16.msra.mxu0 0
      %1108 = vmatprep.subr.bf16.mxu0 0
      %1109 = vmatpush1.bf16.msra.mxu0 0
      %1110 = vmatprep.subr.bf16.mxu0 0
      %1111 = vmatpush1.bf16.msra.mxu0 0
      %1112 = vmatprep.subr.bf16.mxu0 0
      %1113 = vmatpush1.bf16.msra.mxu0 0
      %1114 = vmatprep.subr.bf16.mxu0 0
      %1115 = vmatpush1.bf16.msra.mxu0 0
      %1116 = vmatprep.subr.bf16.mxu0 0
      %1117 = vmatpush1.bf16.msra.mxu0 0
      %1118 = vmatprep.subr.bf16.mxu0 0
      %1119 = vmatpush1.bf16.msra.mxu0 0
      %1120 = vmatprep.subr.bf16.mxu0 0
      %1121 = vmatpush1.bf16.msra.mxu0 0
      %1122 = vmatprep.mubr.bf16.mxu0 0
      %1123 = vmatmul.mubr.bf16.gmra.mrb[0].mxu0 %v896
      %v1124 = vpop.f32.mrb[0].mxu0
      %v1125 = vadd.f32 %v685, %v1124
      %v1126 = vpop.f32.mrb[0].mxu0
      %v1127 = vpop.f32.mrb[0].mxu0
      %v1128 = vpop.f32.mrb[0].mxu0
      %1129 = vdwg.mxu0
      %v1130 = vmul.f32 %v961, 0.01
      %v1131 = vmul.f32 %v963, 0.01
      %v1132 = vmul.f32 %v1002, 0.01
      %v1133 = vmul.f32 %v1004, 0.01
      %v1134 = vmul.f32 %v1043, 0.01
      %v1135 = vmul.f32 %v1045, 0.01
      %v1136 = vmul.f32 %v1084, 0.01
      %v1137 = vmul.f32 %v1086, 0.01
      %v1138 = vmul.f32 %v1125, 0.01
      %v1139 = vmax.f32 %v961, %v1130
      %v1140 = vmax.f32 %v963, %v1131
      %v1141 = vmax.f32 %v1002, %v1132
      %v1142 = vmax.f32 %v1004, %v1133
      %v1143 = vmax.f32 %v1043, %v1134
      %v1144 = vmax.f32 %v1045, %v1135
      %v1145 = vmax.f32 %v1084, %v1136
      %v1146 = vmax.f32 %v1086, %v1137
      %v1147 = vmax.f32 %v1125, %v1138
      %v1148 = vpack.c.bf16 %v1139, %v1139
      %v1149 = vpack.c.bf16 %v1140, %v1140
      %v1150 = vpack.c.bf16 %v1141, %v1141
      %v1151 = vpack.c.bf16 %v1142, %v1142
      %v1152 = vpack.c.bf16 %v1143, %v1143
      %v1153 = vpack.c.bf16 %v1144, %v1144
      %v1154 = vpack.c.bf16 %v1145, %v1145
      %v1155 = vpack.c.bf16 %v1146, %v1146
      %v1156 = vpack.c.bf16 %v1147, %v1147
      %v1166 = vunpack.c.l.b16 %v1148
      %v1167 = vunpack.c.l.b16 %v1149
      %v1168 = vunpack.c.l.b16 %v1150
      %v1169 = vunpack.c.l.b16 %v1151
      %v1170 = vunpack.c.l.b16 %v1152
      %v1171 = vunpack.c.l.b16 %v1153
      %v1172 = vunpack.c.l.b16 %v1154
      %v1173 = vunpack.c.l.b16 %v1155
      %v1174 = vunpack.c.l.b16 %v1156
      %v1175 = vpack.c.b16 %v1167, %v1166
      %v1176 = vpack.c.b16 %v1169, %v1168
      %v1177 = vpack.c.b16 %v1171, %v1170
      %v1178 = vpack.c.b16 %v1173, %v1172
      %v1179 = vpack.c.b16 %v1174, %v1174
      %1185 = vst [vmem:[%s257] sm:$0xff] %v1175
      %1186 = vst [vmem:[%s257 + $0x8] sm:$0xff] %v1176
      %1187 = vst [vmem:[%s257 + $0x10] sm:$0xff] %v1177
      %1188 = vst [vmem:[%s257 + $0x18] sm:$0xff] %v1178
      %1189 = vst [vmem:[%s257 + $0x20] sm:$0xf] %v1179
      %s1190 = smul.u32 9, %s20
      %p1191 = scmp.lt.s32.totalorder %s19, 1
      %s1192 = scalar_select %p1191, %s19, 1
      %p1193 = scmp.lt.s32.totalorder %s21, 0
      %s1194 = scalar_select %p1193, %s21, 0
      %p1195 = scmp.lt.s32.totalorder %s1190, 8
      %s1196 = scalar_select %p1195, %s1190, 8
      %s1197 = smul.addr %s1194, 9
      %s1198 = sadd.s32 %s1196, %s1197
      %s1199 = smul.addr %s1192, 9
      %s1200 = sadd.s32 %s1198, %s1199
      %s1201 = smul.addr %s1200, 4
      %s1202 = scalar_lea.vmem %s3, %s1201
      // Predicated region
      $region37: #{trans_conv_batch_active.1} parent=31 // pred_check
        %p1203 = pneg %p135
      $region38: #{trans_conv_batch_active.1} parent=31 // pred_check_branch
        %1205 = sbr.rel (%p1203) target = $region40
      $region39: #{trans_conv_batch_active.1} parent=31 // pred_region
        %s1206 = smul.u32 9, %s20
      $region40: #{trans_conv_batch_active.1} parent=31 // pred_fallthru
        _
    $region32: #{trans_conv_batch_active.1} parent=5 // pred_fallthru
      _
    %p1207 = scmp.le.s32.totalorder 2, %s9
    // Predicated region
    $region41: #{trans_conv_batch_active.1} parent=5 // pred_check
      %p1208 = pneg %p1207
    $region42: #{trans_conv_batch_active.1} parent=5 // pred_check_branch
      %1210 = sbr.rel (%p1208) target = $region44
    $region43: #{trans_conv_batch_active.1} parent=5 // pred_region
      %s1211 = ssub.s32 %s9, 2
      // Predicated region
      $region45: #{trans_conv_batch_active.1} parent=43 // pred_check
        %p1212 = pneg %p141
      $region46: #{trans_conv_batch_active.1} parent=43 // pred_check_branch
        %1214 = sbr.rel (%p1212) target = $region48
      $region47: #{trans_conv_batch_active.1} parent=43 // pred_region
        %s1215 = smul.u32 9, %s23
        %p1216 = scmp.lt.s32.totalorder %s22, 1
        %s1217 = scalar_select %p1216, %s22, 1
        %p1218 = scmp.lt.s32.totalorder %s24, 0
        %s1219 = scalar_select %p1218, %s24, 0
        %p1220 = scmp.lt.s32.totalorder %s1215, 8
        %s1221 = scalar_select %p1220, %s1215, 8
        %s1222 = smul.addr %s1219, 9
        %s1223 = sadd.s32 %s1221, %s1222
        %s1224 = smul.addr %s1217, 9
        %s1225 = sadd.s32 %s1223, %s1224
        %s1226 = smul.addr %s1225, 4
        %s1227 = scalar_lea.vmem %s3, %s1226
      $region48: #{trans_conv_batch_active.1} parent=43 // pred_fallthru
        _
    $region44: #{trans_conv_batch_active.1} parent=5 // pred_fallthru
      _
  $region6: #{trans_conv_batch_active.1} parent=0 // loop_footer
    %s13 = sadd.s32 1, %s9
  $region7: #{trans_conv_batch_active.1} parent=0 // loop_footer_branch
    %8 = sbr.rel target = $region3
  $region8: #{trans_conv_batch_active.1} parent=0 // loop_exit
    _

</llo_original>
